<compile_context>
chip_gen: v7x
topology: tpu7x:2x2x1
jax: 0.10.0
libtpu: 0.0.40
codegen_flags: <defaults>
</compile_context>

<pallas_src>
import functools

import jax
import jax.numpy as jnp
from jax.experimental import pallas as pl
from jax.experimental.pallas import tpu as pltpu

_EPS = 1e-5
_VMEM_LIMIT = 32 * 1024 * 1024  # safe on v5e/v6e/v7x; blocks are <= ~2 MiB each


def _choose_tile(hw, c, max_block_bytes=2 * 1024 * 1024):
    """Largest lane-dense tile (multiple of 128) dividing hw and fitting the block budget."""
    if hw % 128 != 0:
        return hw  # block dim == full array dim is always legal
    budget = max(128, (max_block_bytes // (4 * max(c, 1))) // 128 * 128)
    tile = 128
    for cand in range(128, hw + 1, 128):
        if hw % cand == 0 and cand <= budget:
            tile = cand
    return tile


# ---------------------------------------------------------------------------
# Kernels
# ---------------------------------------------------------------------------
def _bn_stats_kernel(x_ref, sum_ref, sumsq_ref):
    # x_ref: (1, C, TILE_M);  sum_ref / sumsq_ref: (C, 1) resident accumulators.
    @pl.when((pl.program_id(0) == 0) & (pl.program_id(1) == 0))
    def _():
        sum_ref[...] = jnp.zeros_like(sum_ref)
        sumsq_ref[...] = jnp.zeros_like(sumsq_ref)

    x = x_ref[0].astype(jnp.float32)                         # (C, TILE_M)
    sum_ref[...] += jnp.sum(x, axis=-1, keepdims=True)       # (C, 1)
    sumsq_ref[...] += jnp.sum(x * x, axis=-1, keepdims=True)  # (C, 1)


def _bn_norm_kernel(x_ref, a_ref, b_ref, o_ref):
    # Folded affine: out = a * x + b  (a, b are per-channel (C, 1)).
    x = x_ref[0].astype(jnp.float32)                          # (C, TILE_M)
    out = a_ref[...] * x + b_ref[...]
    o_ref[0] = out.astype(o_ref.dtype)


# ---------------------------------------------------------------------------
# pallas_call wrappers
# ---------------------------------------------------------------------------
def _stats(x3d, tile):
    N, C, HW = x3d.shape
    grid = (N, HW // tile)
    return pl.pallas_call(
        _bn_stats_kernel,
        out_shape=(
            jax.ShapeDtypeStruct((C, 1), jnp.float32),
            jax.ShapeDtypeStruct((C, 1), jnp.float32),
        ),
        grid_spec=pltpu.PrefetchScalarGridSpec(
            num_scalar_prefetch=0,
            grid=grid,
            in_specs=[pl.BlockSpec((1, C, tile), lambda n, m: (n, 0, m))],
            out_specs=(
                pl.BlockSpec((C, 1), lambda n, m: (0, 0)),
                pl.BlockSpec((C, 1), lambda n, m: (0, 0)),
            ),
        ),
        compiler_params=pltpu.CompilerParams(
            dimension_semantics=("arbitrary", "arbitrary"),
            vmem_limit_bytes=_VMEM_LIMIT,
        ),
    )(x3d)


def _normalize(x3d, a_c1, b_c1, tile):
    N, C, HW = x3d.shape
    grid = (N, HW // tile)
    return pl.pallas_call(
        _bn_norm_kernel,
        out_shape=jax.ShapeDtypeStruct((N, C, HW), x3d.dtype),
        grid_spec=pltpu.PrefetchScalarGridSpec(
            num_scalar_prefetch=0,
            grid=grid,
            in_specs=[
                pl.BlockSpec((1, C, tile), lambda n, m: (n, 0, m)),
                pl.BlockSpec((C, 1), lambda n, m: (0, 0)),
                pl.BlockSpec((C, 1), lambda n, m: (0, 0)),
            ],
            out_specs=pl.BlockSpec((1, C, tile), lambda n, m: (n, 0, m)),
        ),
        compiler_params=pltpu.CompilerParams(
            dimension_semantics=("parallel", "parallel"),
            vmem_limit_bytes=_VMEM_LIMIT,
        ),
    )(x3d, a_c1, b_c1)


@jax.jit
def _bn_train_call(x3d, scale_c, shift_c):
    N, C, HW = x3d.shape
    tile = _choose_tile(HW, C)

    sum_c1, sumsq_c1 = _stats(x3d, tile)
    count = float(N * HW)
    mean = sum_c1[:, 0] / count                               # (C,)
    var = jnp.maximum(sumsq_c1[:, 0] / count - mean * mean, 0.0)
    std = jnp.sqrt(var + _EPS)                                # (C,)
    inv_std = jax.lax.rsqrt(var + _EPS)

    a = (scale_c * inv_std).reshape(C, 1)                     # fold scale / std
    b = (shift_c - mean * scale_c * inv_std).reshape(C, 1)    # fold shift / mean

    out3d = _normalize(x3d, a, b, tile)
    return out3d, mean, std


@jax.jit
def _bn_eval_call(x3d, a_c1, b_c1):
    N, C, HW = x3d.shape
    tile = _choose_tile(HW, C)
    return _normalize(x3d, a_c1, b_c1, tile)


# ---------------------------------------------------------------------------
# Module wrapper
# ---------------------------------------------------------------------------
class BatchNormalization:
    """JAX/Pallas port of the PyTorch BatchNormalization module."""

    def __init__(self, num_features, beta=0.9):
        self.beta = beta
        self.num_features = num_features
        self.shift = jnp.zeros((1, num_features, 1, 1), jnp.float32)
        self.scale = 1e-08 + jnp.ones((1, num_features, 1, 1), jnp.float32)
        self.mean = None   # running mean, (1, C, 1, 1)
        self.std = None    # running std,  (1, C, 1, 1)
        self.training = True

    def __call__(self, x):
        N, C, H, W = x.shape
        x3d = x.reshape(N, C, H * W)  # free view; no transpose / extra HBM pass
        scale_c = self.scale.reshape(C).astype(jnp.float32)
        shift_c = self.shift.reshape(C).astype(jnp.float32)

        if self.training:
            out3d, mean_c, std_c = _bn_train_call(x3d, scale_c, shift_c)
            mean = mean_c.reshape(1, C, 1, 1)
            std = std_c.reshape(1, C, 1, 1)
            if self.mean is None:
                self.mean = mean
                self.std = std
            else:
                # TODO(synk): host-side EMA state; not jit/vmap-safe (matches module's python-state semantics).
                self.mean = self.mean * self.beta + mean * (1 - self.beta)
                self.std = self.std * self.beta + std * (1 - self.beta)
        else:
            if self.mean is None or self.std is None:
                raise RuntimeError("eval mode called before any training step populated running stats")
            mean_c = self.mean.reshape(C, 1).astype(jnp.float32)
            std_c = self.std.reshape(C, 1).astype(jnp.float32)
            a = scale_c.reshape(C, 1) / std_c
            b = shift_c.reshape(C, 1) - mean_c * a
            out3d = _bn_eval_call(x3d, a, b)

        return out3d.reshape(N, C, H, W)


if __name__ == "__main__":
    key = jax.random.PRNGKey(0)
    N, C, H, W = 2, 4, 16, 16
    x = jax.random.normal(key, (N, C, H, W), dtype=jnp.float32)

    bn = BatchNormalization(num_features=C, beta=0.9)

    # Training-mode forward (streams stats + normalize kernels, updates EMA).
    y_train = jax.block_until_ready(bn(x))

    # Eval-mode forward using accumulated running stats (pure axpy kernel).
    bn.training = False
    y_eval = jax.block_until_ready(bn(x))

    # Reference: plain-JAX batch norm with population variance and eps inside sqrt.
    mean_ref = jnp.mean(x, axis=(0, 2, 3), keepdims=True)
    var_ref = jnp.mean((x - mean_ref) ** 2, axis=(0, 2, 3), keepdims=True)
    y_ref = bn.scale * ((x - mean_ref) / jnp.sqrt(var_ref + _EPS)) + bn.shift

    assert y_train.shape == (N, C, H, W)
    assert jnp.allclose(y_train, y_ref, atol=1e-4, rtol=1e-4)
    # After one training step, running stats == batch stats, so eval matches too.
    assert jnp.allclose(y_eval, y_ref, atol=1e-4, rtol=1e-4)
    assert jnp.all(jnp.isfinite(y_eval))

    print("KERNEL_OK")
</pallas_src>

<mosaic_0001>
module attributes {stable_mosaic.version = 11 : i64} {
  func.func @_bn_stats_kernel(%arg0: i32, %arg1: i32, %arg2: memref<1x4x256xf32, #tpu.memory_space<vmem>>, %arg3: memref<4x1xf32, #tpu.memory_space<vmem>>, %arg4: memref<4x1xf32, #tpu.memory_space<vmem>>) attributes {dimension_semantics = [#tpu.dimension_semantics<arbitrary>, #tpu.dimension_semantics<arbitrary>], iteration_bounds = array<i64: 2, 1>, scalar_prefetch = 0 : i64, scratch_operands = 0 : i64, tpu.core_type = #tpu.core_type<tc>, window_params = [{transform_indices = @transform_0, window_bounds = array<i64: 1, 4, 256>}, {pipeline_mode = #tpu.pipeline_mode<synchronous>, transform_indices = @transform_1, window_bounds = array<i64: 4, 1>}, {pipeline_mode = #tpu.pipeline_mode<synchronous>, transform_indices = @transform_2, window_bounds = array<i64: 4, 1>}]} {
    %c0_i32 = arith.constant 0 : i32
    %0 = arith.cmpi eq, %arg0, %c0_i32 : i32
    %c0_i32_0 = arith.constant 0 : i32
    %1 = arith.cmpi eq, %arg1, %c0_i32_0 : i32
    %2 = arith.andi %0, %1 : i1
    %3 = arith.extui %2 : i1 to i32
    %c0_i32_1 = arith.constant 0 : i32
    %4 = arith.cmpi ne, %3, %c0_i32_1 : i32
    scf.if %4 {
      %cst_13 = arith.constant 0.000000e+00 : f32
      %18 = vector.broadcast %cst_13 : f32 to vector<4x1xf32>
      %c0_14 = arith.constant 0 : index
      %c0_15 = arith.constant 0 : index
      %19 = vector.load %arg3[%c0_14, %c0_15] : memref<4x1xf32, #tpu.memory_space<vmem>>, vector<4x1xf32>
      tpu.vector_store %arg3[%c0_14, %c0_15], %18 {strides = array<i32>} : memref<4x1xf32, #tpu.memory_space<vmem>>, vector<4x1xf32>,
      %cst_16 = arith.constant 0.000000e+00 : f32
      %20 = vector.broadcast %cst_16 : f32 to vector<4x1xf32>
      %c0_17 = arith.constant 0 : index
      %c0_18 = arith.constant 0 : index
      %21 = vector.load %arg4[%c0_17, %c0_18] : memref<4x1xf32, #tpu.memory_space<vmem>>, vector<4x1xf32>
      tpu.vector_store %arg4[%c0_17, %c0_18], %20 {strides = array<i32>} : memref<4x1xf32, #tpu.memory_space<vmem>>, vector<4x1xf32>,
    } else {
    }
    %c0 = arith.constant 0 : index
    %c0_2 = arith.constant 0 : index
    %c0_3 = arith.constant 0 : index
    %5 = vector.load %arg2[%c0, %c0_2, %c0_3] : memref<1x4x256xf32, #tpu.memory_space<vmem>>, vector<1x4x256xf32>
    %6 = vector.shape_cast %5 : vector<1x4x256xf32> to vector<4x256xf32>
    %c0_4 = arith.constant 0 : index
    %c0_5 = arith.constant 0 : index
    %7 = vector.load %arg3[%c0_4, %c0_5] : memref<4x1xf32, #tpu.memory_space<vmem>>, vector<4x1xf32>
    %cst = arith.constant dense<0.000000e+00> : vector<4xf32>
    %8 = vector.multi_reduction <add>, %6, %cst [1] : vector<4x256xf32> to vector<4xf32>
    %9 = vector.shape_cast %8 : vector<4xf32> to vector<4x1xf32>
    %10 = arith.addf %7, %9 : vector<4x1xf32>
    %c0_6 = arith.constant 0 : index
    %c0_7 = arith.constant 0 : index
    %11 = vector.load %arg3[%c0_6, %c0_7] : memref<4x1xf32, #tpu.memory_space<vmem>>, vector<4x1xf32>
    tpu.vector_store %arg3[%c0_6, %c0_7], %10 {strides = array<i32>} : memref<4x1xf32, #tpu.memory_space<vmem>>, vector<4x1xf32>,
    %c0_8 = arith.constant 0 : index
    %c0_9 = arith.constant 0 : index
    %12 = vector.load %arg4[%c0_8, %c0_9] : memref<4x1xf32, #tpu.memory_space<vmem>>, vector<4x1xf32>
    %13 = arith.mulf %6, %6 : vector<4x256xf32>
    %cst_10 = arith.constant dense<0.000000e+00> : vector<4xf32>
    %14 = vector.multi_reduction <add>, %13, %cst_10 [1] : vector<4x256xf32> to vector<4xf32>
    %15 = vector.shape_cast %14 : vector<4xf32> to vector<4x1xf32>
    %16 = arith.addf %12, %15 : vector<4x1xf32>
    %c0_11 = arith.constant 0 : index
    %c0_12 = arith.constant 0 : index
    %17 = vector.load %arg4[%c0_11, %c0_12] : memref<4x1xf32, #tpu.memory_space<vmem>>, vector<4x1xf32>
    tpu.vector_store %arg4[%c0_11, %c0_12], %16 {strides = array<i32>} : memref<4x1xf32, #tpu.memory_space<vmem>>, vector<4x1xf32>,
    return
  }
  func.func @transform_0(%arg0: i32, %arg1: i32) -> (i32, i32, i32) {
    %c0_i32 = arith.constant 0 : i32
    %c0_i32_0 = arith.constant 0 : i32
    return %arg0, %c0_i32, %arg1 : i32, i32, i32
  }
  func.func @transform_1(%arg0: i32, %arg1: i32) -> (i32, i32) {
    %c0_i32 = arith.constant 0 : i32
    %c0_i32_0 = arith.constant 0 : i32
    %c0_i32_1 = arith.constant 0 : i32
    return %c0_i32, %c0_i32_0 : i32, i32
  }
  func.func @transform_2(%arg0: i32, %arg1: i32) -> (i32, i32) {
    %c0_i32 = arith.constant 0 : i32
    %c0_i32_0 = arith.constant 0 : i32
    %c0_i32_1 = arith.constant 0 : i32
    return %c0_i32, %c0_i32_0 : i32, i32
  }
}

module attributes {stable_mosaic.version = 11 : i64} {
  func.func @_bn_norm_kernel(%arg0: i32, %arg1: i32, %arg2: memref<1x4x256xf32, #tpu.memory_space<vmem>>, %arg3: memref<4x1xf32, #tpu.memory_space<vmem>>, %arg4: memref<4x1xf32, #tpu.memory_space<vmem>>, %arg5: memref<1x4x256xf32, #tpu.memory_space<vmem>>) attributes {dimension_semantics = [#tpu.dimension_semantics<parallel>, #tpu.dimension_semantics<parallel>], iteration_bounds = array<i64: 2, 1>, scalar_prefetch = 0 : i64, scratch_operands = 0 : i64, tpu.core_type = #tpu.core_type<tc>, window_params = [{transform_indices = @transform_0, window_bounds = array<i64: 1, 4, 256>}, {pipeline_mode = #tpu.pipeline_mode<synchronous>, transform_indices = @transform_1, window_bounds = array<i64: 4, 1>}, {pipeline_mode = #tpu.pipeline_mode<synchronous>, transform_indices = @transform_2, window_bounds = array<i64: 4, 1>}, {transform_indices = @transform_3, window_bounds = array<i64: 1, 4, 256>}]} {
    %c0 = arith.constant 0 : index
    %c0_0 = arith.constant 0 : index
    %c0_1 = arith.constant 0 : index
    %0 = vector.load %arg2[%c0, %c0_0, %c0_1] : memref<1x4x256xf32, #tpu.memory_space<vmem>>, vector<1x4x256xf32>
    %1 = vector.shape_cast %0 : vector<1x4x256xf32> to vector<4x256xf32>
    %c0_2 = arith.constant 0 : index
    %c0_3 = arith.constant 0 : index
    %2 = vector.load %arg3[%c0_2, %c0_3] : memref<4x1xf32, #tpu.memory_space<vmem>>, vector<4x1xf32>
    %3 = vector.broadcast %2 : vector<4x1xf32> to vector<4x256xf32>
    %4 = arith.mulf %3, %1 : vector<4x256xf32>
    %c0_4 = arith.constant 0 : index
    %c0_5 = arith.constant 0 : index
    %5 = vector.load %arg4[%c0_4, %c0_5] : memref<4x1xf32, #tpu.memory_space<vmem>>, vector<4x1xf32>
    %6 = vector.broadcast %5 : vector<4x1xf32> to vector<4x256xf32>
    %7 = arith.addf %4, %6 : vector<4x256xf32>
    %c0_6 = arith.constant 0 : index
    %c0_7 = arith.constant 0 : index
    %c0_8 = arith.constant 0 : index
    %8 = vector.load %arg5[%c0_6, %c0_7, %c0_8] : memref<1x4x256xf32, #tpu.memory_space<vmem>>, vector<1x4x256xf32>
    %9 = vector.shape_cast %8 : vector<1x4x256xf32> to vector<4x256xf32>
    %10 = vector.shape_cast %7 : vector<4x256xf32> to vector<1x4x256xf32>
    tpu.vector_store %arg5[%c0_6, %c0_7, %c0_8], %10 {strides = array<i32>} : memref<1x4x256xf32, #tpu.memory_space<vmem>>, vector<1x4x256xf32>,
    return
  }
  func.func @transform_0(%arg0: i32, %arg1: i32) -> (i32, i32, i32) {
    %c0_i32 = arith.constant 0 : i32
    %c0_i32_0 = arith.constant 0 : i32
    return %arg0, %c0_i32, %arg1 : i32, i32, i32
  }
  func.func @transform_1(%arg0: i32, %arg1: i32) -> (i32, i32) {
    %c0_i32 = arith.constant 0 : i32
    %c0_i32_0 = arith.constant 0 : i32
    %c0_i32_1 = arith.constant 0 : i32
    return %c0_i32, %c0_i32_0 : i32, i32
  }
  func.func @transform_2(%arg0: i32, %arg1: i32) -> (i32, i32) {
    %c0_i32 = arith.constant 0 : i32
    %c0_i32_0 = arith.constant 0 : i32
    %c0_i32_1 = arith.constant 0 : i32
    return %c0_i32, %c0_i32_0 : i32, i32
  }
  func.func @transform_3(%arg0: i32, %arg1: i32) -> (i32, i32, i32) {
    %c0_i32 = arith.constant 0 : i32
    %c0_i32_0 = arith.constant 0 : i32
    return %arg0, %c0_i32, %arg1 : i32, i32, i32
  }
}

</mosaic_0001>

<llo_original>
// kernel: _bn_train_call.3
$region0: #{_bn_train_call.3}
  #allocation0 [shape = 'u32[]', space=smem, size = 0x4, offset = 0x4, fixed_abs, tag = 'smem constant byte address 0x4 - core index']
  #allocation1 [shape = 'u32[144,128]{1,0:T(1,128)}', space=vmem, size = 0x12000, scoped, tag = 'internal scratch']
  %s0 = inlined_call_operand.vmem [shape: f32[2,4,256], index: 0, kind: input, shape index: {}]
  %s1 = inlined_call_operand.vmem [shape: f32[4,1], index: 1, kind: input, shape index: {}]
  %s2 = inlined_call_operand.vmem [shape: f32[4,1], index: 2, kind: input, shape index: {}]
  %s3 = inlined_call_operand.hbm [shape: f32[2,4,256], index: 3, kind: output, shape index: {}]
  %s4 = sld [smem:[#allocation0]]
  $region45: #{_bn_train_call.3} parent=0
    _
  %s6 = ssub.s32 1, %s4
  %s7 = scalar_select 0, %s6, %s4
  $region1: #{_bn_train_call.3} parent=0
    #allocation2 [shape = 'u8[8192]{0}', space=vmem, size = 0x2000, scoped, tag = 'output window, operand 0']
    #allocation3 [shape = 's32[2]{0}', space=sflag, size = 0x8, scoped, tag = 'scoped memory for _bn_train_call.3']
    %8 = vsyncpa [#allocation3], 0
    %s9 = scalar_lea.sflag [#allocation3], 1
    %10 = vsyncpa %s9, 0
    loop: start=0, step=1, limit=4
    $region2: #{_bn_train_call.3} parent=1 // loop_pre_header
      _
    $region3: #{_bn_train_call.3} parent=1 // loop_header
      %s12 = sphi 0, %s16
      %p13 = scmp.ge.s32.totalorder %s12, 4
      %s19 = sphi 0, %s31
      %s20 = sphi 0, %s27
      %s21 = sphi 0, %s19
      %s22 = sphi 0, %s20
      %s23 = sphi 0, %s21
      %s24 = sphi 0, %s22
      %s36 = sphi 0, %s38
      %s39 = sphi 0, %s36
      %s40 = sphi 0, %s39
      %s56 = sphi 0, %s40
      %s60 = sphi 0, %s60
      %s62 = sphi 0, %s60
      %s63 = sphi 0, %s62
      %s77 = sphi 0, %s63
      %s81 = sphi 0, %s81
      %s83 = sphi 0, %s81
      %s84 = sphi 0, %s83
      %s98 = sphi 0, %s84
      %s106 = sphi 0, %s108
      %s109 = sphi 0, %s106
      %s110 = sphi 0, %s109
      %s126 = sphi 0, %s110
    $region4: #{_bn_train_call.3} parent=1 // loop_header_branch
      %15 = sbr.rel (%p13) target = $region8
    $region5: #{_bn_train_call.3} parent=1 // loop_body
      %s17 = ssub.s32 %s12, 1
      %s18 = ssub.s32 %s12, 2
      %s25 = sadd.s32 1, %s20
      %p26 = scmp.ge.s32.totalorder %s25, 1
      %s27 = scalar_select %p26, 0, %s25
      %s28 = sadd.s32 1, %s19
      %s29 = scalar_select %p26, %s28, %s19
      %p30 = scmp.ge.s32.totalorder %s29, 2
      %s31 = scalar_select %p30, 0, %s29
      %s32 = ssub.s32 %s19, %s31
      %s33 = ssub.s32 %s20, %s27
      %s34 = sor.u32 %s32, %s33
      %p35 = scmp.eq.s32.totalorder %s34, 0
      %s37 = sadd.s32 %s36, 1
      %s38 = scalar_select %p35, %s36, %s37
      %p41 = pneg %p35
      %p42 = scmp.eq.s32.totalorder %s12, 1
      %p43 = por %p41, %p42
      %p44 = scmp.ne.s32.totalorder %s36, %s39
      %p45 = scmp.eq.s32.totalorder %s12, 0
      %p46 = por %p44, %p45
      %p47 = scmp.ne.s32.totalorder %s36, %s39
      %p48 = scmp.eq.s32.totalorder %s17, 1
      %p49 = por %p47, %p48
      %p50 = scmp.ne.s32.totalorder %s39, %s40
      %p51 = scmp.eq.s32.totalorder %s17, 0
      %p52 = por %p50, %p51
      %p53 = scmp.ne.s32.totalorder %s39, %s40
      %p54 = scmp.eq.s32.totalorder %s18, 1
      %p55 = por %p53, %p54
      %p57 = scmp.ne.s32.totalorder %s40, %s56
      %p58 = scmp.eq.s32.totalorder %s18, 0
      %p59 = por %p57, %p58
      %s61 = sadd.s32 %s60, 1
      %p64 = scmp.eq.s32.totalorder %s12, 1
      %p65 = scmp.ne.s32.totalorder %s60, %s62
      %p66 = scmp.eq.s32.totalorder %s12, 0
      %p67 = por %p65, %p66
      %p68 = scmp.ne.s32.totalorder %s60, %s62
      %p69 = scmp.eq.s32.totalorder %s17, 1
      %p70 = por %p68, %p69
      %p71 = scmp.ne.s32.totalorder %s62, %s63
      %p72 = scmp.eq.s32.totalorder %s17, 0
      %p73 = por %p71, %p72
      %p74 = scmp.ne.s32.totalorder %s62, %s63
      %p75 = scmp.eq.s32.totalorder %s18, 1
      %p76 = por %p74, %p75
      %p78 = scmp.ne.s32.totalorder %s63, %s77
      %p79 = scmp.eq.s32.totalorder %s18, 0
      %p80 = por %p78, %p79
      %s82 = sadd.s32 %s81, 1
      %p85 = scmp.eq.s32.totalorder %s12, 1
      %p86 = scmp.ne.s32.totalorder %s81, %s83
      %p87 = scmp.eq.s32.totalorder %s12, 0
      %p88 = por %p86, %p87
      %p89 = scmp.ne.s32.totalorder %s81, %s83
      %p90 = scmp.eq.s32.totalorder %s17, 1
      %p91 = por %p89, %p90
      %p92 = scmp.ne.s32.totalorder %s83, %s84
      %p93 = scmp.eq.s32.totalorder %s17, 0
      %p94 = por %p92, %p93
      %p95 = scmp.ne.s32.totalorder %s83, %s84
      %p96 = scmp.eq.s32.totalorder %s18, 1
      %p97 = por %p95, %p96
      %p99 = scmp.ne.s32.totalorder %s84, %s98
      %p100 = scmp.eq.s32.totalorder %s18, 0
      %p101 = por %p99, %p100
      %s102 = ssub.s32 %s19, %s31
      %s103 = ssub.s32 %s20, %s27
      %s104 = sor.u32 %s102, %s103
      %p105 = scmp.eq.s32.totalorder %s104, 0
      %s107 = sadd.s32 %s106, 1
      %s108 = scalar_select %p105, %s106, %s107
      %p111 = pneg %p105
      %p112 = scmp.eq.s32.totalorder %s12, 1
      %p113 = por %p111, %p112
      %p114 = scmp.ne.s32.totalorder %s106, %s109
      %p115 = scmp.eq.s32.totalorder %s12, 0
      %p116 = por %p114, %p115
      %p117 = scmp.ne.s32.totalorder %s106, %s109
      %p118 = scmp.eq.s32.totalorder %s17, 1
      %p119 = por %p117, %p118
      %p120 = scmp.ne.s32.totalorder %s109, %s110
      %p121 = scmp.eq.s32.totalorder %s17, 0
      %p122 = por %p120, %p121
      %p123 = scmp.ne.s32.totalorder %s109, %s110
      %p124 = scmp.eq.s32.totalorder %s18, 1
      %p125 = por %p123, %p124
      %p127 = scmp.ne.s32.totalorder %s110, %s126
      %p128 = scmp.eq.s32.totalorder %s18, 0
      %p129 = por %p127, %p128
      %p130 = scmp.le.s32.totalorder 1, %s12
      %p131 = scmp.lt.s32.totalorder %s12, 3
      %p132 = pnand %p130, %p131
      %p133 = pneg %p132
      // Predicated region
      $region9: #{_bn_train_call.3} parent=5 // pred_check
        _
      $region10: #{_bn_train_call.3} parent=5 // pred_check_branch
        %135 = sbr.rel (%p132) target = $region12
      $region11: #{_bn_train_call.3} parent=5 // pred_region
        %s136 = ssub.s32 %s12, 1
        // Predicated region
        $region13: #{_bn_train_call.3} parent=11 // pred_check
          %p137 = pneg %p73
        $region14: #{_bn_train_call.3} parent=11 // pred_check_branch
          %139 = sbr.rel (%p137) target = $region16
        $region15: #{_bn_train_call.3} parent=11 // pred_region
          _
        $region16: #{_bn_train_call.3} parent=11 // pred_fallthru
          _
        // Predicated region
        $region17: #{_bn_train_call.3} parent=11 // pred_check
          %p140 = pneg %p94
        $region18: #{_bn_train_call.3} parent=11 // pred_check_branch
          %142 = sbr.rel (%p140) target = $region20
        $region19: #{_bn_train_call.3} parent=11 // pred_region
          _
        $region20: #{_bn_train_call.3} parent=11 // pred_fallthru
          _
      $region12: #{_bn_train_call.3} parent=5 // pred_fallthru
        _
      %p143 = scmp.lt.s32.totalorder %s12, 2
      // Predicated region
      $region21: #{_bn_train_call.3} parent=5 // pred_check
        %p144 = pneg %p143
      $region22: #{_bn_train_call.3} parent=5 // pred_check_branch
        %146 = sbr.rel (%p144) target = $region24
      $region23: #{_bn_train_call.3} parent=5 // pred_region
        // Predicated region
        $region25: #{_bn_train_call.3} parent=23 // pred_check
          %p147 = pneg %p46
        $region26: #{_bn_train_call.3} parent=23 // pred_check_branch
          %149 = sbr.rel (%p147) target = $region28
        $region27: #{_bn_train_call.3} parent=23 // pred_region
          %s150 = smul.u32 2, %s20
          %p151 = scmp.lt.s32.totalorder %s19, 1
          %s152 = scalar_select %p151, %s19, 1
          %p153 = scmp.lt.s32.totalorder %s150, 1
          %s154 = scalar_select %p153, %s150, 1
          %s155 = smul.addr %s152, 2
          %s156 = sadd.s32 %s154, %s155
          %s157 = smul.addr %s156, 4
          %s158 = scalar_lea.vmem %s0, %s157
          %s159 = smul.u32 2, %s20
        $region28: #{_bn_train_call.3} parent=23 // pred_fallthru
          _
      $region24: #{_bn_train_call.3} parent=5 // pred_fallthru
        _
      %p160 = scmp.le.s32.totalorder 1, %s12
      %p161 = scmp.lt.s32.totalorder %s12, 3
      %p162 = pnand %p160, %p161
      %p163 = pneg %p162
      // Predicated region
      $region29: #{_bn_train_call.3} parent=5 // pred_check
        _
      $region30: #{_bn_train_call.3} parent=5 // pred_check_branch
        %165 = sbr.rel (%p162) target = $region32
      $region31: #{_bn_train_call.3} parent=5 // pred_region
        %s166 = ssub.s32 %s12, 1
        %s167 = smul.u32 2, %s22
        %p168 = scmp.lt.s32.totalorder %s21, 1
        %s169 = scalar_select %p168, %s21, 1
        %p170 = scmp.lt.s32.totalorder %s167, 1
        %s171 = scalar_select %p170, %s167, 1
        %s172 = smul.addr %s169, 2
        %s173 = sadd.s32 %s171, %s172
        %s174 = smul.addr %s173, 4
        %s175 = scalar_lea.vmem %s0, %s174
        %p176 = pneg %p52
        %p177 = pneg %p49
        %p178 = pneg %p73
        %p179 = pneg %p70
        %p180 = pneg %p94
        %p181 = pneg %p91
        %p182 = pneg %p122
        %p183 = pneg %p119
        %s184 = sand.u32 %s109, 1
        %s185 = scalar_lea.sflag [#allocation3], %s184
        %s186 = sand.u32 %s109, 1
        %s187 = smul.addr %s186, 8
        %s188 = scalar_lea.vmem [#allocation2], %s187
        %s189 = smul.u32 2, %s22
        %p190 = scmp.lt.s32.totalorder %s21, 1
        %s191 = scalar_select %p190, %s21, 1
        %p192 = scmp.lt.s32.totalorder %s189, 1
        %s193 = scalar_select %p192, %s189, 1
        %s194 = smul.addr %s191, 2
        %s195 = sadd.s32 %s193, %s194
        %s196 = smul.addr %s195, 4
        %s197 = scalar_lea.vmem %s0, %s196
        %s198 = smul.u32 2, %s22
        %s199 = smul.u32 2, %s22
        %v200 = vld [vmem:[%s197] sm:$0xff]
        %v201 = vld [vmem:[%s1] sm:$0xf]
        %203 = vset.pattern.permute.xlu0 0
        %204 = vperm.xlu0 %203, %v201
        %v205 = vpop.permute.xlu0 %204
        %v208 = vcombine.high %v200, %v200
        %v210 = vmul.f32 %v205, %v200
        %v211 = vmul.f32 %v205, %v208
        %v212 = vld [vmem:[%s2] sm:$0xf]
        %214 = vset.pattern.permute.xlu0 0
        %215 = vperm.xlu0 %214, %v212
        %v216 = vpop.permute.xlu0 %215
        %v218 = vadd.f32 %v210, %v216
        %v219 = vadd.f32 %v211, %v216
        %v222 = vcombine.low %v218, %v219
        %224 = vst [vmem:[%s188] sm:$0xff] %v222
        %s225 = sand.u32 %s109, 1
        %s226 = scalar_lea.sflag [#allocation3], %s225
        %s227 = sand.u32 %s109, 1
        %s228 = smul.addr %s227, 8
        %s229 = scalar_lea.vmem [#allocation2], %s228
        // Predicated region
        $region33: #{_bn_train_call.3} parent=31 // pred_check
          %p230 = pneg %p119
        $region34: #{_bn_train_call.3} parent=31 // pred_check_branch
          %232 = sbr.rel (%p230) target = $region36
        $region35: #{_bn_train_call.3} parent=31 // pred_region
          %s233 = smul.u32 2, %s22
          %s235 = ssub.s32 128, 128
          %236 = vsyncadd %s226, %s235
          %s237 = smul.addr %s21, 2
          %s238 = sadd.s32 %s233, %s237
          %s239 = smul.addr %s238, 64
          %s240 = scalar_lea.hbm %s3, %s239
          %s242 = sshll.u32 %s229, 4
          %s243 = int_to_ptr.vmem [resolvable:$true] %s242
          %245 = dma.vmem_to_hbm [thread:$0]  %s243, 128, %s240, %s226
        $region36: #{_bn_train_call.3} parent=31 // pred_fallthru
          _
      $region32: #{_bn_train_call.3} parent=5 // pred_fallthru
        _
      %p246 = scmp.le.s32.totalorder 2, %s12
      // Predicated region
      $region37: #{_bn_train_call.3} parent=5 // pred_check
        %p247 = pneg %p246
      $region38: #{_bn_train_call.3} parent=5 // pred_check_branch
        %249 = sbr.rel (%p247) target = $region40
      $region39: #{_bn_train_call.3} parent=5 // pred_region
        %s250 = ssub.s32 %s12, 2
        // Predicated region
        $region41: #{_bn_train_call.3} parent=39 // pred_check
          %p251 = pneg %p125
        $region42: #{_bn_train_call.3} parent=39 // pred_check_branch
          %253 = sbr.rel (%p251) target = $region44
        $region43: #{_bn_train_call.3} parent=39 // pred_region
          %s254 = sand.u32 %s110, 1
          %s255 = scalar_lea.sflag [#allocation3], %s254
          %s256 = sand.u32 %s110, 1
          %s257 = smul.addr %s256, 8
          %s258 = scalar_lea.vmem [#allocation2], %s257
          %259 = dma.done %s255, 128
        $region44: #{_bn_train_call.3} parent=39 // pred_fallthru
          _
      $region40: #{_bn_train_call.3} parent=5 // pred_fallthru
        _
    $region6: #{_bn_train_call.3} parent=1 // loop_footer
      %s16 = sadd.s32 1, %s12
    $region7: #{_bn_train_call.3} parent=1 // loop_footer_branch
      %11 = sbr.rel target = $region3
    $region8: #{_bn_train_call.3} parent=1 // loop_exit
      _
    %260 = vsyncpa [#allocation3], 1
    %s261 = scalar_lea.sflag [#allocation3], 1
    %262 = vsyncpa %s261, 1

// kernel: _bn_train_call.2
$region0: #{_bn_train_call.2}
  #allocation0 [shape = 'u32[]', space=smem, size = 0x4, offset = 0x4, fixed_abs, tag = 'smem constant byte address 0x4 - core index']
  #allocation1 [shape = 'u32[144,128]{1,0:T(1,128)}', space=vmem, size = 0x12000, scoped, tag = 'internal scratch']
  %s0 = inlined_call_operand.hbm [shape: f32[2,4,256], index: 0, kind: input, shape index: {}]
  %s1 = inlined_call_operand.vmem [shape: f32[4,1], index: 1, kind: output, shape index: {0}]
  %s2 = inlined_call_operand.vmem [shape: f32[4,1], index: 2, kind: output, shape index: {1}]
  %3 = xla_tuple %s1, %s2
  %s4 = sld [smem:[#allocation0]]
  $region53: #{_bn_train_call.2} parent=0
    _
  %s6 = ssub.s32 1, %s4
  %s7 = scalar_select 0, %s6, %s4
  $region1: #{_bn_train_call.2} parent=0
    #allocation2 [shape = 'u8[8192]{0}', space=vmem, size = 0x2000, scoped, tag = 'input window, operand 0']
    #allocation3 [shape = 's32[2]{0}', space=sflag, size = 0x8, scoped, tag = 'scoped memory for _bn_train_call.2']
    %8 = vsyncpa [#allocation3], 0
    %s9 = scalar_lea.sflag [#allocation3], 1
    %10 = vsyncpa %s9, 0
    loop: start=0, step=1, limit=4
    $region2: #{_bn_train_call.2} parent=1 // loop_pre_header
      _
    $region3: #{_bn_train_call.2} parent=1 // loop_header
      %s12 = sphi 0, %s16
      %p13 = scmp.ge.s32.totalorder %s12, 4
      %s19 = sphi 0, %s31
      %s20 = sphi 0, %s27
      %s21 = sphi 0, %s19
      %s22 = sphi 0, %s20
      %s23 = sphi 0, %s21
      %s24 = sphi 0, %s22
      %s36 = sphi 0, %s38
      %s39 = sphi 0, %s36
      %s40 = sphi 0, %s39
      %s56 = sphi 0, %s40
      %s60 = sphi 0, %s60
      %s62 = sphi 0, %s60
      %s63 = sphi 0, %s62
      %s77 = sphi 0, %s63
      %s81 = sphi 0, %s81
      %s83 = sphi 0, %s81
      %s84 = sphi 0, %s83
      %s98 = sphi 0, %s84
    $region4: #{_bn_train_call.2} parent=1 // loop_header_branch
      %15 = sbr.rel (%p13) target = $region8
    $region5: #{_bn_train_call.2} parent=1 // loop_body
      %s17 = ssub.s32 %s12, 1
      %s18 = ssub.s32 %s12, 2
      %s25 = sadd.s32 1, %s20
      %p26 = scmp.ge.s32.totalorder %s25, 1
      %s27 = scalar_select %p26, 0, %s25
      %s28 = sadd.s32 1, %s19
      %s29 = scalar_select %p26, %s28, %s19
      %p30 = scmp.ge.s32.totalorder %s29, 2
      %s31 = scalar_select %p30, 0, %s29
      %s32 = ssub.s32 %s19, %s31
      %s33 = ssub.s32 %s20, %s27
      %s34 = sor.u32 %s32, %s33
      %p35 = scmp.eq.s32.totalorder %s34, 0
      %s37 = sadd.s32 %s36, 1
      %s38 = scalar_select %p35, %s36, %s37
      %p41 = pneg %p35
      %p42 = scmp.eq.s32.totalorder %s12, 1
      %p43 = por %p41, %p42
      %p44 = scmp.ne.s32.totalorder %s36, %s39
      %p45 = scmp.eq.s32.totalorder %s12, 0
      %p46 = por %p44, %p45
      %p47 = scmp.ne.s32.totalorder %s36, %s39
      %p48 = scmp.eq.s32.totalorder %s17, 1
      %p49 = por %p47, %p48
      %p50 = scmp.ne.s32.totalorder %s39, %s40
      %p51 = scmp.eq.s32.totalorder %s17, 0
      %p52 = por %p50, %p51
      %p53 = scmp.ne.s32.totalorder %s39, %s40
      %p54 = scmp.eq.s32.totalorder %s18, 1
      %p55 = por %p53, %p54
      %p57 = scmp.ne.s32.totalorder %s40, %s56
      %p58 = scmp.eq.s32.totalorder %s18, 0
      %p59 = por %p57, %p58
      %s61 = sadd.s32 %s60, 1
      %p64 = scmp.eq.s32.totalorder %s12, 1
      %p65 = scmp.ne.s32.totalorder %s60, %s62
      %p66 = scmp.eq.s32.totalorder %s12, 0
      %p67 = por %p65, %p66
      %p68 = scmp.ne.s32.totalorder %s60, %s62
      %p69 = scmp.eq.s32.totalorder %s17, 1
      %p70 = por %p68, %p69
      %p71 = scmp.ne.s32.totalorder %s62, %s63
      %p72 = scmp.eq.s32.totalorder %s17, 0
      %p73 = por %p71, %p72
      %p74 = scmp.ne.s32.totalorder %s62, %s63
      %p75 = scmp.eq.s32.totalorder %s18, 1
      %p76 = por %p74, %p75
      %p78 = scmp.ne.s32.totalorder %s63, %s77
      %p79 = scmp.eq.s32.totalorder %s18, 0
      %p80 = por %p78, %p79
      %s82 = sadd.s32 %s81, 1
      %p85 = scmp.eq.s32.totalorder %s12, 1
      %p86 = scmp.ne.s32.totalorder %s81, %s83
      %p87 = scmp.eq.s32.totalorder %s12, 0
      %p88 = por %p86, %p87
      %p89 = scmp.ne.s32.totalorder %s81, %s83
      %p90 = scmp.eq.s32.totalorder %s17, 1
      %p91 = por %p89, %p90
      %p92 = scmp.ne.s32.totalorder %s83, %s84
      %p93 = scmp.eq.s32.totalorder %s17, 0
      %p94 = por %p92, %p93
      %p95 = scmp.ne.s32.totalorder %s83, %s84
      %p96 = scmp.eq.s32.totalorder %s18, 1
      %p97 = por %p95, %p96
      %p99 = scmp.ne.s32.totalorder %s84, %s98
      %p100 = scmp.eq.s32.totalorder %s18, 0
      %p101 = por %p99, %p100
      %p102 = scmp.le.s32.totalorder 1, %s12
      %p103 = scmp.lt.s32.totalorder %s12, 3
      %p104 = pnand %p102, %p103
      %p105 = pneg %p104
      // Predicated region
      $region9: #{_bn_train_call.2} parent=5 // pred_check
        _
      $region10: #{_bn_train_call.2} parent=5 // pred_check_branch
        %107 = sbr.rel (%p104) target = $region12
      $region11: #{_bn_train_call.2} parent=5 // pred_region
        %s108 = ssub.s32 %s12, 1
      $region12: #{_bn_train_call.2} parent=5 // pred_fallthru
        _
      %p109 = scmp.lt.s32.totalorder %s12, 2
      // Predicated region
      $region13: #{_bn_train_call.2} parent=5 // pred_check
        %p110 = pneg %p109
      $region14: #{_bn_train_call.2} parent=5 // pred_check_branch
        %112 = sbr.rel (%p110) target = $region16
      $region15: #{_bn_train_call.2} parent=5 // pred_region
        // Predicated region
        $region17: #{_bn_train_call.2} parent=15 // pred_check
          %p113 = pneg %p46
        $region18: #{_bn_train_call.2} parent=15 // pred_check_branch
          %115 = sbr.rel (%p113) target = $region20
        $region19: #{_bn_train_call.2} parent=15 // pred_region
          %s116 = sand.u32 %s36, 1
          %s117 = scalar_lea.sflag [#allocation3], %s116
          %s118 = sand.u32 %s36, 1
          %s119 = smul.addr %s118, 8
          %s120 = scalar_lea.vmem [#allocation2], %s119
          %s121 = smul.u32 2, %s20
          %s123 = ssub.s32 128, 128
          %124 = vsyncadd %s117, %s123
          %s125 = smul.addr %s19, 2
          %s126 = sadd.s32 %s121, %s125
          %s127 = smul.addr %s126, 64
          %s128 = scalar_lea.hbm %s0, %s127
          %s130 = sshll.u32 %s120, 4
          %s131 = int_to_ptr.vmem [resolvable:$true] %s130
          %133 = dma.hbm_to_vmem [thread:$0]  %s128, 128, %s131, %s117
        $region20: #{_bn_train_call.2} parent=15 // pred_fallthru
          _
      $region16: #{_bn_train_call.2} parent=5 // pred_fallthru
        _
      %p134 = scmp.le.s32.totalorder 1, %s12
      %p135 = scmp.lt.s32.totalorder %s12, 3
      %p136 = pnand %p134, %p135
      %p137 = pneg %p136
      // Predicated region
      $region21: #{_bn_train_call.2} parent=5 // pred_check
        _
      $region22: #{_bn_train_call.2} parent=5 // pred_check_branch
        %139 = sbr.rel (%p136) target = $region24
      $region23: #{_bn_train_call.2} parent=5 // pred_region
        %s140 = ssub.s32 %s12, 1
        %s141 = sand.u32 %s39, 1
        %s142 = scalar_lea.sflag [#allocation3], %s141
        %s143 = sand.u32 %s39, 1
        %s144 = smul.addr %s143, 8
        %s145 = scalar_lea.vmem [#allocation2], %s144
        // Predicated region
        $region25: #{_bn_train_call.2} parent=23 // pred_check
          %p146 = pneg %p52
        $region26: #{_bn_train_call.2} parent=23 // pred_check_branch
          %148 = sbr.rel (%p146) target = $region28
        $region27: #{_bn_train_call.2} parent=23 // pred_region
          %149 = dma.done %s142, 128
        $region28: #{_bn_train_call.2} parent=23 // pred_fallthru
          _
        %s150 = sand.u32 %s39, 1
        %s151 = scalar_lea.sflag [#allocation3], %s150
        %s152 = sand.u32 %s39, 1
        %s153 = smul.addr %s152, 8
        %s154 = scalar_lea.vmem [#allocation2], %s153
        %p155 = pneg %p52
        %p156 = pneg %p49
        %p157 = pneg %p73
        %p158 = pneg %p70
        %p159 = pneg %p94
        %p160 = pneg %p91
        %s161 = smul.u32 2, %s22
        %p162 = scmp.eq.s32.totalorder %s21, 0
        %p163 = scmp.eq.s32.totalorder %s22, 0
        %p164 = pnand %p162, %p163
        %p165 = pneg %p164
        // Predicated region
        $region29: #{_bn_train_call.2} parent=23 // pred_check
          _
        $region30: #{_bn_train_call.2} parent=23 // pred_check_branch
          %167 = sbr.rel (%p164) target = $region32
        $region31: #{_bn_train_call.2} parent=23 // pred_region
          %vm168 = vcmask 3072
          %169 = vst.msk [vmem:[%s1] sm:$0xf] %vm168, 0.0
          %170 = vst.msk [vmem:[%s2] sm:$0xf] %vm168, 0.0
        $region32: #{_bn_train_call.2} parent=23 // pred_fallthru
          _
        %v171 = vld [vmem:[%s145] sm:$0xff]
        %v172 = vld [vmem:[%s1] sm:$0xf]
        %v174 = vcombine.high %v171, %v171
        %vm176 = vcmask 1043456
        %v177 = vsel %vm176, %v171, 0.0
        %v178 = vsel %vm176, %v174, 0.0
        %v179 = vadd.f32 %v177, %v178
        %180 = vadd.xlane.f32.xlu0 %v179
        %v181 = vpop.xlane.xlu0 %180
        %v182 = vadd.f32 %v172, %v181
        %vm183 = vcmask 3072
        %184 = vst.msk [vmem:[%s1] sm:$0xf] %vm183, %v182
        %v185 = vld [vmem:[%s2] sm:$0xf]
        %v186 = vmul.f32 %v171, %v171
        %v188 = vcombine.high %v186, %v186
        %v190 = vsel %vm176, %v186, 0.0
        %v191 = vsel %vm176, %v188, 0.0
        %v192 = vadd.f32 %v190, %v191
        %193 = vadd.xlane.f32.xlu0 %v192
        %v194 = vpop.xlane.xlu0 %193
        %v195 = vadd.f32 %v185, %v194
        %196 = vst.msk [vmem:[%s2] sm:$0xf] %vm183, %v195
        // Predicated region
        $region33: #{_bn_train_call.2} parent=23 // pred_check
          %p197 = pneg %p70
        $region34: #{_bn_train_call.2} parent=23 // pred_check_branch
          %199 = sbr.rel (%p197) target = $region36
        $region35: #{_bn_train_call.2} parent=23 // pred_region
          _
        $region36: #{_bn_train_call.2} parent=23 // pred_fallthru
          _
        // Predicated region
        $region37: #{_bn_train_call.2} parent=23 // pred_check
          %p200 = pneg %p91
        $region38: #{_bn_train_call.2} parent=23 // pred_check_branch
          %202 = sbr.rel (%p200) target = $region40
        $region39: #{_bn_train_call.2} parent=23 // pred_region
          _
        $region40: #{_bn_train_call.2} parent=23 // pred_fallthru
          _
        // Predicated region
        $region41: #{_bn_train_call.2} parent=23 // pred_check
          %p203 = pneg %p70
        $region42: #{_bn_train_call.2} parent=23 // pred_check_branch
          %205 = sbr.rel (%p203) target = $region44
        $region43: #{_bn_train_call.2} parent=23 // pred_region
          _
        $region44: #{_bn_train_call.2} parent=23 // pred_fallthru
          _
        // Predicated region
        $region45: #{_bn_train_call.2} parent=23 // pred_check
          %p206 = pneg %p91
        $region46: #{_bn_train_call.2} parent=23 // pred_check_branch
          %208 = sbr.rel (%p206) target = $region48
        $region47: #{_bn_train_call.2} parent=23 // pred_region
          _
        $region48: #{_bn_train_call.2} parent=23 // pred_fallthru
          _
      $region24: #{_bn_train_call.2} parent=5 // pred_fallthru
        _
      %p209 = scmp.le.s32.totalorder 2, %s12
      // Predicated region
      $region49: #{_bn_train_call.2} parent=5 // pred_check
        %p210 = pneg %p209
      $region50: #{_bn_train_call.2} parent=5 // pred_check_branch
        %212 = sbr.rel (%p210) target = $region52
      $region51: #{_bn_train_call.2} parent=5 // pred_region
        %s213 = ssub.s32 %s12, 2
      $region52: #{_bn_train_call.2} parent=5 // pred_fallthru
        _
    $region6: #{_bn_train_call.2} parent=1 // loop_footer
      %s16 = sadd.s32 1, %s12
    $region7: #{_bn_train_call.2} parent=1 // loop_footer_branch
      %11 = sbr.rel target = $region3
    $region8: #{_bn_train_call.2} parent=1 // loop_exit
      _
    %214 = vsyncpa [#allocation3], 1
    %s215 = scalar_lea.sflag [#allocation3], 1
    %216 = vsyncpa %s215, 1

</llo_original>
